<compile_context>
chip_gen: v5e
topology: v5e:2x2
jax: 0.10.0
libtpu: 0.0.40
codegen_flags: <defaults>
</compile_context>

<pallas_src>
import jax
import jax.numpy as jnp
from jax.experimental import pallas as pl
from jax.experimental.pallas import tpu as pltpu


def atom_encoder_kernel(idx_ref, etab_ref, out_ref):
    """One grid step: gather TILE_N embedding rows with a one-hot MXU matmul.

    idx_ref : (TILE_N // PACK, PACK) int32 ids, pre-clamped to [0, V) and pre-offset
              by j * V_pad in packed column j (both done once in the wrapper).
    etab_ref: (PACK*V_pad, PACK*D) f32 block-diagonal expanded table; same block every
              grid step -> DMA'd once, stays resident in VMEM.
    out_ref : (TILE_N // PACK, PACK*D) f32 output tile — PACK atom rows per 128-lane
              row, written as full lane-dense vector stores straight from the MXU.
    """
    rows_p = idx_ref.shape[0]
    pack = idx_ref.shape[1]
    k_dim = etab_ref.shape[0]

    idxs = idx_ref[...]                                          # (rows_p, pack) i32
    iota = jax.lax.broadcasted_iota(jnp.int32, (rows_p, k_dim), 1)
    hit = iota == idxs[:, 0:1]
    for j in range(1, pack):                                     # static; pack <= 4
        hit = hit | (iota == idxs[:, j:j + 1])
    one_hot = hit.astype(jnp.float32)

    # Exact gather: for every output element exactly one product in the contraction
    # is nonzero (1.0 * table value, all in f32), so this equals a direct lookup.
    out_ref[...] = jnp.dot(
        one_hot, etab_ref[...], preferred_element_type=jnp.float32
    ).astype(out_ref.dtype)


def _round_up(a: int, b: int) -> int:
    return ((a + b - 1) // b) * b


def simple_atom_encoder(x, emb_weight, *, tile_n=None, min_pallas_rows=64):
    """nn.Embedding forward: x (..., 1) integer ids -> (..., D) embedding rows."""
    v, d = emb_weight.shape
    lead = x.shape[:-1] if x.shape[-1] == 1 else x.shape         # torch squeeze(-1)
    idx = x.reshape(-1).astype(jnp.int32)
    n = idx.shape[0]

    # nn.Embedding raises on out-of-range ids; clamp once, vectorized (intentional).
    idx = jnp.clip(idx, 0, v - 1)

    # Tiny inputs are dominated by custom-call launch + pipeline setup: plain gather.
    if n < min_pallas_rows:
        return jnp.take(emb_weight, idx, axis=0).reshape(lead + (d,))

    # Pack PACK embedding rows per 128-lane output row (lane-dense stores).
    pack = 128 // d if (d < 128 and 128 % d == 0) else 1
    row_align = 8 * pack                       # keeps tile_n // pack a sublane multiple
    v_pad = _round_up(v, 128)                  # one-hot contraction axis, lane multiple

    if tile_n is None:
        # Big tiles amortize the ~0.35us per-step overhead; keep >= 2 grid steps so
        # the "parallel" axis can shard rows across v7x's two TensorCores.
        target = pl.cdiv(n, 2) if n > 2 * row_align else n
        tile_n = min(_round_up(max(target, row_align), row_align), 4096)
    tile_n = _round_up(tile_n, row_align)
    n_pad = _round_up(n, tile_n)
    if n_pad != n:
        idx = jnp.pad(idx, (0, n_pad - n))     # padded rows get id 0; sliced off below

    # Offset packed column j's ids by j*v_pad so each column selects a disjoint slice
    # of the expanded table's contraction axis; the reshape is a free row-major view.
    offs = (jnp.arange(n_pad, dtype=jnp.int32) % pack) * v_pad
    idx_packed = (idx + offs).reshape(n_pad // pack, pack)

    # Block-diagonal expanded table: row j*v_pad + v carries table[v] in output lanes
    # [j*d, (j+1)*d). For the default module sizes this is (512, 128) f32 = 256 KiB.
    table = jnp.pad(emb_weight.astype(jnp.float32), ((0, v_pad - v), (0, 0)))
    etab = jnp.einsum("jk,vc->jvkc", jnp.eye(pack, dtype=jnp.float32), table)
    etab = etab.reshape(pack * v_pad, pack * d)

    out_packed = pl.pallas_call(
        atom_encoder_kernel,
        out_shape=jax.ShapeDtypeStruct((n_pad // pack, pack * d), jnp.float32),
        grid_spec=pltpu.PrefetchScalarGridSpec(
            num_scalar_prefetch=0,
            grid=(n_pad // tile_n,),
            in_specs=[
                # Per-tile ids in VMEM (tiny, contiguous DMA).
                pl.BlockSpec((tile_n // pack, pack), lambda i: (i, 0)),
                # Full expanded table, same block every step -> resident in VMEM.
                pl.BlockSpec((pack * v_pad, pack * d), lambda i: (0, 0)),
            ],
            out_specs=pl.BlockSpec((tile_n // pack, pack * d), lambda i: (i, 0)),
        ),
        compiler_params=pltpu.CompilerParams(
            dimension_semantics=("parallel",),     # shard row tiles across TCs (v7x)
        ),
    )(idx_packed, etab)

    out = out_packed.reshape(n_pad, d)[:n]         # free row-major un-pack; drop pad
    return out.reshape(lead + (d,)).astype(emb_weight.dtype)


if __name__ == "__main__":
    key = jax.random.PRNGKey(0)
    k_w, k_x = jax.random.split(key)

    num_embeddings, emb_dim = 119, 32
    n_atoms = 200   # exercises tail padding and a 2-step "parallel" grid

    # Deterministic parameter init (matches nn.Embedding weight shape).
    emb_weight = jax.random.normal(k_w, (num_embeddings, emb_dim), dtype=jnp.float32)
    # Atom ids with a trailing singleton dim, as the module's forward expects.
    x = jax.random.randint(k_x, (n_atoms, 1), 0, num_embeddings, dtype=jnp.int32)

    out = jax.block_until_ready(simple_atom_encoder(x, emb_weight))

    # Reference check against a plain JAX gather.
    ref = jnp.take(emb_weight, x[:, 0], axis=0)
    assert out.shape == (n_atoms, emb_dim)
    assert jnp.allclose(out, ref, atol=1e-6), "mismatch vs reference embedding lookup"

    # Tiny-N path (launch-overhead bound) falls back to a plain gather.
    out_small = jax.block_until_ready(simple_atom_encoder(x[:8], emb_weight))
    assert out_small.shape == (8, emb_dim)
    assert jnp.allclose(out_small, ref[:8], atol=1e-6), "mismatch on small-N fallback"

    print("KERNEL_OK")
</pallas_src>

<mosaic_0001>
module attributes {stable_mosaic.version = 11 : i64} {
  func.func @atom_encoder_kernel(%arg0: i32, %arg1: memref<32x4xi32, #tpu.memory_space<vmem>>, %arg2: memref<512x128xf32, #tpu.memory_space<vmem>>, %arg3: memref<32x128xf32, #tpu.memory_space<vmem>>) attributes {dimension_semantics = [#tpu.dimension_semantics<parallel>], iteration_bounds = array<i64: 2>, scalar_prefetch = 0 : i64, scratch_operands = 0 : i64, tpu.core_type = #tpu.core_type<tc>, window_params = [{transform_indices = @transform_0, window_bounds = array<i64: 32, 4>}, {pipeline_mode = #tpu.pipeline_mode<synchronous>, transform_indices = @transform_1, window_bounds = array<i64: 512, 128>}, {transform_indices = @transform_2, window_bounds = array<i64: 32, 128>}]} {
    %c0 = arith.constant 0 : index
    %c0_0 = arith.constant 0 : index
    %0 = vector.load %arg1[%c0, %c0_0] : memref<32x4xi32, #tpu.memory_space<vmem>>, vector<32x4xi32>
    %1 = tpu.iota {dimensions = array<i32: 1>} : vector<32x512xi32>
    %2 = vector.extract_strided_slice %0 {offsets = [0, 0], sizes = [32, 1], strides = [1, 1]} : vector<32x4xi32> to vector<32x1xi32>
    %3 = vector.broadcast %2 : vector<32x1xi32> to vector<32x512xi32>
    %4 = arith.cmpi eq, %1, %3 : vector<32x512xi32>
    %5 = vector.extract_strided_slice %0 {offsets = [0, 1], sizes = [32, 1], strides = [1, 1]} : vector<32x4xi32> to vector<32x1xi32>
    %6 = vector.broadcast %5 : vector<32x1xi32> to vector<32x512xi32>
    %7 = arith.cmpi eq, %1, %6 : vector<32x512xi32>
    %8 = arith.ori %4, %7 : vector<32x512xi1>
    %9 = vector.extract_strided_slice %0 {offsets = [0, 2], sizes = [32, 1], strides = [1, 1]} : vector<32x4xi32> to vector<32x1xi32>
    %10 = vector.broadcast %9 : vector<32x1xi32> to vector<32x512xi32>
    %11 = arith.cmpi eq, %1, %10 : vector<32x512xi32>
    %12 = arith.ori %8, %11 : vector<32x512xi1>
    %13 = vector.extract_strided_slice %0 {offsets = [0, 3], sizes = [32, 1], strides = [1, 1]} : vector<32x4xi32> to vector<32x1xi32>
    %14 = vector.broadcast %13 : vector<32x1xi32> to vector<32x512xi32>
    %15 = arith.cmpi eq, %1, %14 : vector<32x512xi32>
    %16 = arith.ori %12, %15 : vector<32x512xi1>
    %17 = arith.extui %16 : vector<32x512xi1> to vector<32x512xi32>
    %18 = arith.sitofp %17 : vector<32x512xi32> to vector<32x512xf32>
    %c0_1 = arith.constant 0 : index
    %c0_2 = arith.constant 0 : index
    %19 = vector.load %arg2[%c0_1, %c0_2] : memref<512x128xf32, #tpu.memory_space<vmem>>, vector<512x128xf32>
    %cst = arith.constant dense<0.000000e+00> : vector<32x128xf32>
    %20 = tpu.matmul %18, %19, %cst {dimension_numbers = #tpu.dot_dimension_numbers<[1], [0], [0], [1], [0, 0, 1, 1], [], []>} : vector<32x512xf32>, vector<512x128xf32>, vector<32x128xf32> -> vector<32x128xf32>
    %c0_3 = arith.constant 0 : index
    %c0_4 = arith.constant 0 : index
    %21 = vector.load %arg3[%c0_3, %c0_4] : memref<32x128xf32, #tpu.memory_space<vmem>>, vector<32x128xf32>
    tpu.vector_store %arg3[%c0_3, %c0_4], %20 {strides = array<i32>} : memref<32x128xf32, #tpu.memory_space<vmem>>, vector<32x128xf32>,
    return
  }
  func.func @transform_0(%arg0: i32) -> (i32, i32) {
    %c0_i32 = arith.constant 0 : i32
    %c0_i32_0 = arith.constant 0 : i32
    return %arg0, %c0_i32 : i32, i32
  }
  func.func @transform_1(%arg0: i32) -> (i32, i32) {
    %c0_i32 = arith.constant 0 : i32
    %c0_i32_0 = arith.constant 0 : i32
    %c0_i32_1 = arith.constant 0 : i32
    return %c0_i32, %c0_i32_0 : i32, i32
  }
  func.func @transform_2(%arg0: i32) -> (i32, i32) {
    %c0_i32 = arith.constant 0 : i32
    %c0_i32_0 = arith.constant 0 : i32
    return %arg0, %c0_i32 : i32, i32
  }
}

</mosaic_0001>

<llo_original>
// kernel: tpu_custom_call.1
$region0: #{tpu_custom_call.1}
  #allocation0 [shape = 'u32[]', space=smem, size = 0x4, offset = 0x4, fixed_abs, tag = 'smem constant byte address 0x4 - core index']
  #allocation1 [shape = 'u32[72,128]{1,0:T(1,128)}', space=vmem, size = 0x9000, scoped, tag = 'internal scratch']
  %s0 = inlined_call_operand.vmem [shape: s32[64,4], index: 0, kind: input, shape index: {}]
  %s1 = inlined_call_operand.hbm [shape: f32[512,128], index: 1, kind: input, shape index: {}]
  %s2 = inlined_call_operand.hbm [shape: f32[64,128], index: 2, kind: output, shape index: {}]
  %s3 = sld [smem:[#allocation0]]
  $region45: #{tpu_custom_call.1} parent=0
    _
  %s5 = ssub.s32 1, %s3
  %s6 = scalar_select 0, %s5, %s3
  $region1: #{tpu_custom_call.1} parent=0
    #allocation2 [shape = 'u8[262144]{0}', space=vmem, size = 0x40000, scoped, tag = 'input window, operand 1, single buffered']
    #allocation3 [shape = 's32[2]{0}', space=sflag, size = 0x8, scoped, tag = 'scoped memory for tpu_custom_call.1']
    #allocation4 [shape = 's32[2]{0}', space=sflag, size = 0x8, scoped, tag = 'scoped memory for tpu_custom_call.1']
    #allocation5 [shape = 'u8[32768]{0}', space=vmem, size = 0x8000, scoped, tag = 'output window, operand 0']
    %7 = vsyncpa [#allocation3], 0
    %8 = vsyncpa [#allocation4], 0
    %s9 = scalar_lea.sflag [#allocation4], 1
    %10 = vsyncpa %s9, 0
    loop: start=0, step=1, limit=4
    $region2: #{tpu_custom_call.1} parent=1 // loop_pre_header
      _
    $region3: #{tpu_custom_call.1} parent=1 // loop_header
      %s12 = sphi 0, %s16
      %p13 = scmp.ge.s32.totalorder %s12, 4
      %s22 = sphi 0, %s24
      %s25 = sphi 0, %s22
      %s26 = sphi 0, %s25
      %s42 = sphi 0, %s26
      %s46 = sphi 0, %s46
      %s48 = sphi 0, %s46
      %s49 = sphi 0, %s48
      %s63 = sphi 0, %s49
      %s69 = sphi 0, %s71
      %s72 = sphi 0, %s69
      %s73 = sphi 0, %s72
      %s89 = sphi 0, %s73
    $region4: #{tpu_custom_call.1} parent=1 // loop_header_branch
      %15 = sbr.rel (%p13) target = $region8
    $region5: #{tpu_custom_call.1} parent=1 // loop_body
      %s17 = ssub.s32 %s12, 1
      %s18 = ssub.s32 %s12, 2
      %s19 = sadd.s32 %s12, 1
      %s20 = ssub.s32 %s12, %s19
      %p21 = scmp.eq.s32.totalorder %s20, 0
      %s23 = sadd.s32 %s22, 1
      %s24 = scalar_select %p21, %s22, %s23
      %p27 = pneg %p21
      %p28 = scmp.eq.s32.totalorder %s12, 1
      %p29 = por %p27, %p28
      %p30 = scmp.ne.s32.totalorder %s22, %s25
      %p31 = scmp.eq.s32.totalorder %s12, 0
      %p32 = por %p30, %p31
      %p33 = scmp.ne.s32.totalorder %s22, %s25
      %p34 = scmp.eq.s32.totalorder %s17, 1
      %p35 = por %p33, %p34
      %p36 = scmp.ne.s32.totalorder %s25, %s26
      %p37 = scmp.eq.s32.totalorder %s17, 0
      %p38 = por %p36, %p37
      %p39 = scmp.ne.s32.totalorder %s25, %s26
      %p40 = scmp.eq.s32.totalorder %s18, 1
      %p41 = por %p39, %p40
      %p43 = scmp.ne.s32.totalorder %s26, %s42
      %p44 = scmp.eq.s32.totalorder %s18, 0
      %p45 = por %p43, %p44
      %s47 = sadd.s32 %s46, 1
      %p50 = scmp.eq.s32.totalorder %s12, 1
      %p51 = scmp.ne.s32.totalorder %s46, %s48
      %p52 = scmp.eq.s32.totalorder %s12, 0
      %p53 = por %p51, %p52
      %p54 = scmp.ne.s32.totalorder %s46, %s48
      %p55 = scmp.eq.s32.totalorder %s17, 1
      %p56 = por %p54, %p55
      %p57 = scmp.ne.s32.totalorder %s48, %s49
      %p58 = scmp.eq.s32.totalorder %s17, 0
      %p59 = por %p57, %p58
      %p60 = scmp.ne.s32.totalorder %s48, %s49
      %p61 = scmp.eq.s32.totalorder %s18, 1
      %p62 = por %p60, %p61
      %p64 = scmp.ne.s32.totalorder %s49, %s63
      %p65 = scmp.eq.s32.totalorder %s18, 0
      %p66 = por %p64, %p65
      %s67 = ssub.s32 %s12, %s19
      %p68 = scmp.eq.s32.totalorder %s67, 0
      %s70 = sadd.s32 %s69, 1
      %s71 = scalar_select %p68, %s69, %s70
      %p74 = pneg %p68
      %p75 = scmp.eq.s32.totalorder %s12, 1
      %p76 = por %p74, %p75
      %p77 = scmp.ne.s32.totalorder %s69, %s72
      %p78 = scmp.eq.s32.totalorder %s12, 0
      %p79 = por %p77, %p78
      %p80 = scmp.ne.s32.totalorder %s69, %s72
      %p81 = scmp.eq.s32.totalorder %s17, 1
      %p82 = por %p80, %p81
      %p83 = scmp.ne.s32.totalorder %s72, %s73
      %p84 = scmp.eq.s32.totalorder %s17, 0
      %p85 = por %p83, %p84
      %p86 = scmp.ne.s32.totalorder %s72, %s73
      %p87 = scmp.eq.s32.totalorder %s18, 1
      %p88 = por %p86, %p87
      %p90 = scmp.ne.s32.totalorder %s73, %s89
      %p91 = scmp.eq.s32.totalorder %s18, 0
      %p92 = por %p90, %p91
      %p93 = scmp.le.s32.totalorder 1, %s12
      %p94 = scmp.lt.s32.totalorder %s12, 3
      %p95 = pnand %p93, %p94
      %p96 = pneg %p95
      // Predicated region
      $region9: #{tpu_custom_call.1} parent=5 // pred_check
        _
      $region10: #{tpu_custom_call.1} parent=5 // pred_check_branch
        %98 = sbr.rel (%p95) target = $region12
      $region11: #{tpu_custom_call.1} parent=5 // pred_region
        %s99 = ssub.s32 %s12, 1
        // Predicated region
        $region13: #{tpu_custom_call.1} parent=11 // pred_check
          %p100 = pneg %p59
        $region14: #{tpu_custom_call.1} parent=11 // pred_check_branch
          %102 = sbr.rel (%p100) target = $region16
        $region15: #{tpu_custom_call.1} parent=11 // pred_region
          %104 = vsyncadd [#allocation3], 0
          %s105 = sshll.u32 %s1, 4
          %s106 = int_to_ptr.hbm [resolvable:$true] %s105
          %s107 = sshll.u32 [#allocation2], 4
          %s108 = int_to_ptr.vmem [resolvable:$true] %s107
          %113 = dma.hbm_to_vmem [thread:$0]  %s106, 8192, %s108, [#allocation3], 128, 128, 8
        $region16: #{tpu_custom_call.1} parent=11 // pred_fallthru
          _
      $region12: #{tpu_custom_call.1} parent=5 // pred_fallthru
        _
      %p114 = scmp.lt.s32.totalorder %s12, 2
      // Predicated region
      $region17: #{tpu_custom_call.1} parent=5 // pred_check
        %p115 = pneg %p114
      $region18: #{tpu_custom_call.1} parent=5 // pred_check_branch
        %117 = sbr.rel (%p115) target = $region20
      $region19: #{tpu_custom_call.1} parent=5 // pred_region
        // Predicated region
        $region21: #{tpu_custom_call.1} parent=19 // pred_check
          %p118 = pneg %p32
        $region22: #{tpu_custom_call.1} parent=19 // pred_check_branch
          %120 = sbr.rel (%p118) target = $region24
        $region23: #{tpu_custom_call.1} parent=19 // pred_region
          %s121 = smul.u32 4, %s12
          %p122 = scmp.lt.s32.totalorder %s121, 7
          %s123 = scalar_select %p122, %s121, 7
          %s124 = smul.addr %s123, 8
          %s125 = scalar_lea.vmem %s0, %s124
          %s126 = smul.u32 4, %s12
        $region24: #{tpu_custom_call.1} parent=19 // pred_fallthru
          _
      $region20: #{tpu_custom_call.1} parent=5 // pred_fallthru
        _
      %p127 = scmp.le.s32.totalorder 1, %s12
      %p128 = scmp.lt.s32.totalorder %s12, 3
      %p129 = pnand %p127, %p128
      %p130 = pneg %p129
      // Predicated region
      $region25: #{tpu_custom_call.1} parent=5 // pred_check
        _
      $region26: #{tpu_custom_call.1} parent=5 // pred_check_branch
        %132 = sbr.rel (%p129) target = $region28
      $region27: #{tpu_custom_call.1} parent=5 // pred_region
        %s133 = ssub.s32 %s12, 1
        // Predicated region
        $region29: #{tpu_custom_call.1} parent=27 // pred_check
          %p134 = pneg %p59
        $region30: #{tpu_custom_call.1} parent=27 // pred_check_branch
          %136 = sbr.rel (%p134) target = $region32
        $region31: #{tpu_custom_call.1} parent=27 // pred_region
          %138 = dma.done [#allocation3], 8192
        $region32: #{tpu_custom_call.1} parent=27 // pred_fallthru
          _
        %s139 = smul.u32 4, %s17
        %p140 = scmp.lt.s32.totalorder %s139, 7
        %s141 = scalar_select %p140, %s139, 7
        %s142 = smul.addr %s141, 8
        %s143 = scalar_lea.vmem %s0, %s142
        %p144 = pneg %p38
        %p145 = pneg %p35
        %p146 = pneg %p59
        %p147 = pneg %p56
        %p148 = pneg %p85
        %p149 = pneg %p82
        %s150 = sand.u32 %s72, 1
        %s151 = scalar_lea.sflag [#allocation4], %s150
        %s152 = sand.u32 %s72, 1
        %s153 = smul.addr %s152, 32
        %s154 = scalar_lea.vmem [#allocation5], %s153
        %s155 = smul.u32 4, %s17
        %p156 = scmp.lt.s32.totalorder %s155, 7
        %s157 = scalar_select %p156, %s155, 7
        %s158 = smul.addr %s157, 8
        %s159 = scalar_lea.vmem %s0, %s158
        %s160 = smul.u32 4, %s17
        %s161 = smul.u32 4, %s17
        %v162 = vld [vmem:[%s159] sm:$0xff]
        %v163 = vld [vmem:[%s159 + $0x8] sm:$0xff]
        %v164 = vld [vmem:[%s159 + $0x10] sm:$0xff]
        %v165 = vld [vmem:[%s159 + $0x18] sm:$0xff]
        %v166 = vlaneseq
        %v167 = vand.u32 %v166, 127
        %v168 = vadd.s32 %v167, 128
        %v169 = vadd.s32 %v167, 256
        %v170 = vadd.s32 %v167, 384
        %171 = vset.pattern.permute.xlu0 0
        %172 = vperm.xlu0 %171, %v162
        %v173 = vpop.permute.xlu0 %172
        %174 = vset.pattern.permute.xlu0 0
        %175 = vperm.xlu0 %174, %v163
        %v176 = vpop.permute.xlu0 %175
        %177 = vset.pattern.permute.xlu0 0
        %178 = vperm.xlu0 %177, %v164
        %v179 = vpop.permute.xlu0 %178
        %180 = vset.pattern.permute.xlu0 0
        %181 = vperm.xlu0 %180, %v165
        %v182 = vpop.permute.xlu0 %181
        %vm183 = vcmp.eq.s32.totalorder %v167, %v173
        %vm184 = vcmp.eq.s32.totalorder %v168, %v173
        %vm185 = vcmp.eq.s32.totalorder %v169, %v173
        %vm186 = vcmp.eq.s32.totalorder %v170, %v173
        %vm187 = vcmp.eq.s32.totalorder %v167, %v176
        %vm188 = vcmp.eq.s32.totalorder %v168, %v176
        %vm189 = vcmp.eq.s32.totalorder %v169, %v176
        %vm190 = vcmp.eq.s32.totalorder %v170, %v176
        %vm191 = vcmp.eq.s32.totalorder %v167, %v179
        %vm192 = vcmp.eq.s32.totalorder %v168, %v179
        %vm193 = vcmp.eq.s32.totalorder %v169, %v179
        %vm194 = vcmp.eq.s32.totalorder %v170, %v179
        %vm195 = vcmp.eq.s32.totalorder %v167, %v182
        %vm196 = vcmp.eq.s32.totalorder %v168, %v182
        %vm197 = vcmp.eq.s32.totalorder %v169, %v182
        %vm198 = vcmp.eq.s32.totalorder %v170, %v182
        %199 = vset.pattern.permute.xlu0 1
        %200 = vperm.xlu0 %199, %v162
        %v201 = vpop.permute.xlu0 %200
        %202 = vset.pattern.permute.xlu0 1
        %203 = vperm.xlu0 %202, %v163
        %v204 = vpop.permute.xlu0 %203
        %205 = vset.pattern.permute.xlu0 1
        %206 = vperm.xlu0 %205, %v164
        %v207 = vpop.permute.xlu0 %206
        %208 = vset.pattern.permute.xlu0 1
        %209 = vperm.xlu0 %208, %v165
        %v210 = vpop.permute.xlu0 %209
        %vm211 = vcmp.eq.s32.totalorder %v167, %v201
        %vm212 = vcmp.eq.s32.totalorder %v168, %v201
        %vm213 = vcmp.eq.s32.totalorder %v169, %v201
        %vm214 = vcmp.eq.s32.totalorder %v170, %v201
        %vm215 = vcmp.eq.s32.totalorder %v167, %v204
        %vm216 = vcmp.eq.s32.totalorder %v168, %v204
        %vm217 = vcmp.eq.s32.totalorder %v169, %v204
        %vm218 = vcmp.eq.s32.totalorder %v170, %v204
        %vm219 = vcmp.eq.s32.totalorder %v167, %v207
        %vm220 = vcmp.eq.s32.totalorder %v168, %v207
        %vm221 = vcmp.eq.s32.totalorder %v169, %v207
        %vm222 = vcmp.eq.s32.totalorder %v170, %v207
        %vm223 = vcmp.eq.s32.totalorder %v167, %v210
        %vm224 = vcmp.eq.s32.totalorder %v168, %v210
        %vm225 = vcmp.eq.s32.totalorder %v169, %v210
        %vm226 = vcmp.eq.s32.totalorder %v170, %v210
        %vm227 = vmor %vm183, %vm211
        %vm228 = vmor %vm184, %vm212
        %vm229 = vmor %vm185, %vm213
        %vm230 = vmor %vm186, %vm214
        %vm231 = vmor %vm187, %vm215
        %vm232 = vmor %vm188, %vm216
        %vm233 = vmor %vm189, %vm217
        %vm234 = vmor %vm190, %vm218
        %vm235 = vmor %vm191, %vm219
        %vm236 = vmor %vm192, %vm220
        %vm237 = vmor %vm193, %vm221
        %vm238 = vmor %vm194, %vm222
        %vm239 = vmor %vm195, %vm223
        %vm240 = vmor %vm196, %vm224
        %vm241 = vmor %vm197, %vm225
        %vm242 = vmor %vm198, %vm226
        %243 = vset.pattern.permute.xlu0 2
        %244 = vperm.xlu0 %243, %v162
        %v245 = vpop.permute.xlu0 %244
        %246 = vset.pattern.permute.xlu0 2
        %247 = vperm.xlu0 %246, %v163
        %v248 = vpop.permute.xlu0 %247
        %249 = vset.pattern.permute.xlu0 2
        %250 = vperm.xlu0 %249, %v164
        %v251 = vpop.permute.xlu0 %250
        %252 = vset.pattern.permute.xlu0 2
        %253 = vperm.xlu0 %252, %v165
        %v254 = vpop.permute.xlu0 %253
        %vm255 = vcmp.eq.s32.totalorder %v167, %v245
        %vm256 = vcmp.eq.s32.totalorder %v168, %v245
        %vm257 = vcmp.eq.s32.totalorder %v169, %v245
        %vm258 = vcmp.eq.s32.totalorder %v170, %v245
        %vm259 = vcmp.eq.s32.totalorder %v167, %v248
        %vm260 = vcmp.eq.s32.totalorder %v168, %v248
        %vm261 = vcmp.eq.s32.totalorder %v169, %v248
        %vm262 = vcmp.eq.s32.totalorder %v170, %v248
        %vm263 = vcmp.eq.s32.totalorder %v167, %v251
        %vm264 = vcmp.eq.s32.totalorder %v168, %v251
        %vm265 = vcmp.eq.s32.totalorder %v169, %v251
        %vm266 = vcmp.eq.s32.totalorder %v170, %v251
        %vm267 = vcmp.eq.s32.totalorder %v167, %v254
        %vm268 = vcmp.eq.s32.totalorder %v168, %v254
        %vm269 = vcmp.eq.s32.totalorder %v169, %v254
        %vm270 = vcmp.eq.s32.totalorder %v170, %v254
        %vm271 = vmor %vm227, %vm255
        %vm272 = vmor %vm228, %vm256
        %vm273 = vmor %vm229, %vm257
        %vm274 = vmor %vm230, %vm258
        %vm275 = vmor %vm231, %vm259
        %vm276 = vmor %vm232, %vm260
        %vm277 = vmor %vm233, %vm261
        %vm278 = vmor %vm234, %vm262
        %vm279 = vmor %vm235, %vm263
        %vm280 = vmor %vm236, %vm264
        %vm281 = vmor %vm237, %vm265
        %vm282 = vmor %vm238, %vm266
        %vm283 = vmor %vm239, %vm267
        %vm284 = vmor %vm240, %vm268
        %vm285 = vmor %vm241, %vm269
        %vm286 = vmor %vm242, %vm270
        %287 = vset.pattern.permute.xlu0 3
        %288 = vperm.xlu0 %287, %v162
        %v289 = vpop.permute.xlu0 %288
        %290 = vset.pattern.permute.xlu0 3
        %291 = vperm.xlu0 %290, %v163
        %v292 = vpop.permute.xlu0 %291
        %293 = vset.pattern.permute.xlu0 3
        %294 = vperm.xlu0 %293, %v164
        %v295 = vpop.permute.xlu0 %294
        %296 = vset.pattern.permute.xlu0 3
        %297 = vperm.xlu0 %296, %v165
        %v298 = vpop.permute.xlu0 %297
        %vm299 = vcmp.eq.s32.totalorder %v167, %v289
        %vm300 = vcmp.eq.s32.totalorder %v168, %v289
        %vm301 = vcmp.eq.s32.totalorder %v169, %v289
        %vm302 = vcmp.eq.s32.totalorder %v170, %v289
        %vm303 = vcmp.eq.s32.totalorder %v167, %v292
        %vm304 = vcmp.eq.s32.totalorder %v168, %v292
        %vm305 = vcmp.eq.s32.totalorder %v169, %v292
        %vm306 = vcmp.eq.s32.totalorder %v170, %v292
        %vm307 = vcmp.eq.s32.totalorder %v167, %v295
        %vm308 = vcmp.eq.s32.totalorder %v168, %v295
        %vm309 = vcmp.eq.s32.totalorder %v169, %v295
        %vm310 = vcmp.eq.s32.totalorder %v170, %v295
        %vm311 = vcmp.eq.s32.totalorder %v167, %v298
        %vm312 = vcmp.eq.s32.totalorder %v168, %v298
        %vm313 = vcmp.eq.s32.totalorder %v169, %v298
        %vm314 = vcmp.eq.s32.totalorder %v170, %v298
        %vm315 = vmor %vm271, %vm299
        %vm316 = vmor %vm272, %vm300
        %vm317 = vmor %vm273, %vm301
        %vm318 = vmor %vm274, %vm302
        %vm319 = vmor %vm275, %vm303
        %vm320 = vmor %vm276, %vm304
        %vm321 = vmor %vm277, %vm305
        %vm322 = vmor %vm278, %vm306
        %vm323 = vmor %vm279, %vm307
        %vm324 = vmor %vm280, %vm308
        %vm325 = vmor %vm281, %vm309
        %vm326 = vmor %vm282, %vm310
        %vm327 = vmor %vm283, %vm311
        %vm328 = vmor %vm284, %vm312
        %vm329 = vmor %vm285, %vm313
        %vm330 = vmor %vm286, %vm314
        %v331 = vsel %vm315, 1, 0
        %v332 = vsel %vm316, 1, 0
        %v333 = vsel %vm317, 1, 0
        %v334 = vsel %vm318, 1, 0
        %v335 = vsel %vm319, 1, 0
        %v336 = vsel %vm320, 1, 0
        %v337 = vsel %vm321, 1, 0
        %v338 = vsel %vm322, 1, 0
        %v339 = vsel %vm323, 1, 0
        %v340 = vsel %vm324, 1, 0
        %v341 = vsel %vm325, 1, 0
        %v342 = vsel %vm326, 1, 0
        %v343 = vsel %vm327, 1, 0
        %v344 = vsel %vm328, 1, 0
        %v345 = vsel %vm329, 1, 0
        %v346 = vsel %vm330, 1, 0
        %v347 = vcvt.s32.f32 %v331
        %v348 = vcvt.s32.f32 %v332
        %v349 = vcvt.s32.f32 %v333
        %v350 = vcvt.s32.f32 %v334
        %v351 = vcvt.s32.f32 %v335
        %v352 = vcvt.s32.f32 %v336
        %v353 = vcvt.s32.f32 %v337
        %v354 = vcvt.s32.f32 %v338
        %v355 = vcvt.s32.f32 %v339
        %v356 = vcvt.s32.f32 %v340
        %v357 = vcvt.s32.f32 %v341
        %v358 = vcvt.s32.f32 %v342
        %v359 = vcvt.s32.f32 %v343
        %v360 = vcvt.s32.f32 %v344
        %v361 = vcvt.s32.f32 %v345
        %v362 = vcvt.s32.f32 %v346
        %v363 = vld [vmem:[#allocation2] sm:$0xff]
        %v364 = vld [vmem:[#allocation2 + $0x8] sm:$0xff]
        %v365 = vld [vmem:[#allocation2 + $0x10] sm:$0xff]
        %v366 = vld [vmem:[#allocation2 + $0x18] sm:$0xff]
        %v367 = vld [vmem:[#allocation2 + $0x20] sm:$0xff]
        %v368 = vld [vmem:[#allocation2 + $0x28] sm:$0xff]
        %v369 = vld [vmem:[#allocation2 + $0x30] sm:$0xff]
        %v370 = vld [vmem:[#allocation2 + $0x38] sm:$0xff]
        %v371 = vld [vmem:[#allocation2 + $0x40] sm:$0xff]
        %v372 = vld [vmem:[#allocation2 + $0x48] sm:$0xff]
        %v373 = vld [vmem:[#allocation2 + $0x50] sm:$0xff]
        %v374 = vld [vmem:[#allocation2 + $0x58] sm:$0xff]
        %v375 = vld [vmem:[#allocation2 + $0x60] sm:$0xff]
        %v376 = vld [vmem:[#allocation2 + $0x68] sm:$0xff]
        %v377 = vld [vmem:[#allocation2 + $0x70] sm:$0xff]
        %v378 = vld [vmem:[#allocation2 + $0x78] sm:$0xff]
        %v379 = vld [vmem:[#allocation2 + $0x80] sm:$0xff]
        %v380 = vld [vmem:[#allocation2 + $0x88] sm:$0xff]
        %v381 = vld [vmem:[#allocation2 + $0x90] sm:$0xff]
        %v382 = vld [vmem:[#allocation2 + $0x98] sm:$0xff]
        %v383 = vld [vmem:[#allocation2 + $0xa0] sm:$0xff]
        %v384 = vld [vmem:[#allocation2 + $0xa8] sm:$0xff]
        %v385 = vld [vmem:[#allocation2 + $0xb0] sm:$0xff]
        %v386 = vld [vmem:[#allocation2 + $0xb8] sm:$0xff]
        %v387 = vld [vmem:[#allocation2 + $0xc0] sm:$0xff]
        %v388 = vld [vmem:[#allocation2 + $0xc8] sm:$0xff]
        %v389 = vld [vmem:[#allocation2 + $0xd0] sm:$0xff]
        %v390 = vld [vmem:[#allocation2 + $0xd8] sm:$0xff]
        %v391 = vld [vmem:[#allocation2 + $0xe0] sm:$0xff]
        %v392 = vld [vmem:[#allocation2 + $0xe8] sm:$0xff]
        %v393 = vld [vmem:[#allocation2 + $0xf0] sm:$0xff]
        %v394 = vld [vmem:[#allocation2 + $0xf8] sm:$0xff]
        %v395 = vld [vmem:[#allocation2 + $0x100] sm:$0xff]
        %v396 = vld [vmem:[#allocation2 + $0x108] sm:$0xff]
        %v397 = vld [vmem:[#allocation2 + $0x110] sm:$0xff]
        %v398 = vld [vmem:[#allocation2 + $0x118] sm:$0xff]
        %v399 = vld [vmem:[#allocation2 + $0x120] sm:$0xff]
        %v400 = vld [vmem:[#allocation2 + $0x128] sm:$0xff]
        %v401 = vld [vmem:[#allocation2 + $0x130] sm:$0xff]
        %v402 = vld [vmem:[#allocation2 + $0x138] sm:$0xff]
        %v403 = vld [vmem:[#allocation2 + $0x140] sm:$0xff]
        %v404 = vld [vmem:[#allocation2 + $0x148] sm:$0xff]
        %v405 = vld [vmem:[#allocation2 + $0x150] sm:$0xff]
        %v406 = vld [vmem:[#allocation2 + $0x158] sm:$0xff]
        %v407 = vld [vmem:[#allocation2 + $0x160] sm:$0xff]
        %v408 = vld [vmem:[#allocation2 + $0x168] sm:$0xff]
        %v409 = vld [vmem:[#allocation2 + $0x170] sm:$0xff]
        %v410 = vld [vmem:[#allocation2 + $0x178] sm:$0xff]
        %v411 = vld [vmem:[#allocation2 + $0x180] sm:$0xff]
        %v412 = vld [vmem:[#allocation2 + $0x188] sm:$0xff]
        %v413 = vld [vmem:[#allocation2 + $0x190] sm:$0xff]
        %v414 = vld [vmem:[#allocation2 + $0x198] sm:$0xff]
        %v415 = vld [vmem:[#allocation2 + $0x1a0] sm:$0xff]
        %v416 = vld [vmem:[#allocation2 + $0x1a8] sm:$0xff]
        %v417 = vld [vmem:[#allocation2 + $0x1b0] sm:$0xff]
        %v418 = vld [vmem:[#allocation2 + $0x1b8] sm:$0xff]
        %v419 = vld [vmem:[#allocation2 + $0x1c0] sm:$0xff]
        %v420 = vld [vmem:[#allocation2 + $0x1c8] sm:$0xff]
        %v421 = vld [vmem:[#allocation2 + $0x1d0] sm:$0xff]
        %v422 = vld [vmem:[#allocation2 + $0x1d8] sm:$0xff]
        %v423 = vld [vmem:[#allocation2 + $0x1e0] sm:$0xff]
        %v424 = vld [vmem:[#allocation2 + $0x1e8] sm:$0xff]
        %v425 = vld [vmem:[#allocation2 + $0x1f0] sm:$0xff]
        %v426 = vld [vmem:[#allocation2 + $0x1f8] sm:$0xff]
        %427 = vmatpush.msra.mxu0 %v378
        %428 = vmatpush.msra.mxu0 %v377
        %429 = vmatpush.msra.mxu0 %v376
        %430 = vmatpush.msra.mxu0 %v375
        %431 = vmatpush.msra.mxu0 %v374
        %432 = vmatpush.msra.mxu0 %v373
        %433 = vmatpush.msra.mxu0 %v372
        %434 = vmatpush.msra.mxu0 %v371
        %435 = vmatpush.msra.mxu0 %v370
        %436 = vmatpush.msra.mxu0 %v369
        %437 = vmatpush.msra.mxu0 %v368
        %438 = vmatpush.msra.mxu0 %v367
        %439 = vmatpush.msra.mxu0 %v366
        %440 = vmatpush.msra.mxu0 %v365
        %441 = vmatpush.msra.mxu0 %v364
        %442 = vmatpush.msra.mxu0 %v363
        %443 = vmatmul.f32.gmra.mxu0 %v347
        %v444 = vpop.f32.mrf.mxu0
        %v445 = vadd.f32 0.0, %v444
        %446 = vmatmul.f32.gmra.mxu0 %v351
        %v447 = vpop.f32.mrf.mxu0
        %v448 = vadd.f32 0.0, %v447
        %449 = vmatmul.f32.gmra.mxu0 %v355
        %v450 = vpop.f32.mrf.mxu0
        %v451 = vadd.f32 0.0, %v450
        %452 = vmatmul.f32.gmra.mxu0 %v359
        %v453 = vpop.f32.mrf.mxu0
        %v454 = vadd.f32 0.0, %v453
        %455 = vdwg.mxu0
        %456 = vmatpush.msra.mxu0 %v394
        %457 = vmatpush.msra.mxu0 %v393
        %458 = vmatpush.msra.mxu0 %v392
        %459 = vmatpush.msra.mxu0 %v391
        %460 = vmatpush.msra.mxu0 %v390
        %461 = vmatpush.msra.mxu0 %v389
        %462 = vmatpush.msra.mxu0 %v388
        %463 = vmatpush.msra.mxu0 %v387
        %464 = vmatpush.msra.mxu0 %v386
        %465 = vmatpush.msra.mxu0 %v385
        %466 = vmatpush.msra.mxu0 %v384
        %467 = vmatpush.msra.mxu0 %v383
        %468 = vmatpush.msra.mxu0 %v382
        %469 = vmatpush.msra.mxu0 %v381
        %470 = vmatpush.msra.mxu0 %v380
        %471 = vmatpush.msra.mxu0 %v379
        %472 = vmatmul.f32.gmra.mxu0 %v348
        %v473 = vpop.f32.mrf.mxu0
        %v474 = vadd.f32 %v445, %v473
        %475 = vmatmul.f32.gmra.mxu0 %v352
        %v476 = vpop.f32.mrf.mxu0
        %v477 = vadd.f32 %v448, %v476
        %478 = vmatmul.f32.gmra.mxu0 %v356
        %v479 = vpop.f32.mrf.mxu0
        %v480 = vadd.f32 %v451, %v479
        %481 = vmatmul.f32.gmra.mxu0 %v360
        %v482 = vpop.f32.mrf.mxu0
        %v483 = vadd.f32 %v454, %v482
        %484 = vdwg.mxu0
        %485 = vmatpush.msra.mxu0 %v410
        %486 = vmatpush.msra.mxu0 %v409
        %487 = vmatpush.msra.mxu0 %v408
        %488 = vmatpush.msra.mxu0 %v407
        %489 = vmatpush.msra.mxu0 %v406
        %490 = vmatpush.msra.mxu0 %v405
        %491 = vmatpush.msra.mxu0 %v404
        %492 = vmatpush.msra.mxu0 %v403
        %493 = vmatpush.msra.mxu0 %v402
        %494 = vmatpush.msra.mxu0 %v401
        %495 = vmatpush.msra.mxu0 %v400
        %496 = vmatpush.msra.mxu0 %v399
        %497 = vmatpush.msra.mxu0 %v398
        %498 = vmatpush.msra.mxu0 %v397
        %499 = vmatpush.msra.mxu0 %v396
        %500 = vmatpush.msra.mxu0 %v395
        %501 = vmatmul.f32.gmra.mxu0 %v349
        %v502 = vpop.f32.mrf.mxu0
        %v503 = vadd.f32 %v474, %v502
        %504 = vmatmul.f32.gmra.mxu0 %v353
        %v505 = vpop.f32.mrf.mxu0
        %v506 = vadd.f32 %v477, %v505
        %507 = vmatmul.f32.gmra.mxu0 %v357
        %v508 = vpop.f32.mrf.mxu0
        %v509 = vadd.f32 %v480, %v508
        %510 = vmatmul.f32.gmra.mxu0 %v361
        %v511 = vpop.f32.mrf.mxu0
        %v512 = vadd.f32 %v483, %v511
        %513 = vdwg.mxu0
        %514 = vmatpush.msra.mxu0 %v426
        %515 = vmatpush.msra.mxu0 %v425
        %516 = vmatpush.msra.mxu0 %v424
        %517 = vmatpush.msra.mxu0 %v423
        %518 = vmatpush.msra.mxu0 %v422
        %519 = vmatpush.msra.mxu0 %v421
        %520 = vmatpush.msra.mxu0 %v420
        %521 = vmatpush.msra.mxu0 %v419
        %522 = vmatpush.msra.mxu0 %v418
        %523 = vmatpush.msra.mxu0 %v417
        %524 = vmatpush.msra.mxu0 %v416
        %525 = vmatpush.msra.mxu0 %v415
        %526 = vmatpush.msra.mxu0 %v414
        %527 = vmatpush.msra.mxu0 %v413
        %528 = vmatpush.msra.mxu0 %v412
        %529 = vmatpush.msra.mxu0 %v411
        %530 = vmatmul.f32.gmra.mxu0 %v350
        %v531 = vpop.f32.mrf.mxu0
        %v532 = vadd.f32 %v503, %v531
        %533 = vmatmul.f32.gmra.mxu0 %v354
        %v534 = vpop.f32.mrf.mxu0
        %v535 = vadd.f32 %v506, %v534
        %536 = vmatmul.f32.gmra.mxu0 %v358
        %v537 = vpop.f32.mrf.mxu0
        %v538 = vadd.f32 %v509, %v537
        %539 = vmatmul.f32.gmra.mxu0 %v362
        %v540 = vpop.f32.mrf.mxu0
        %v541 = vadd.f32 %v512, %v540
        %542 = vdwg.mxu0
        %543 = vst [vmem:[%s154] sm:$0xff] %v532
        %544 = vst [vmem:[%s154 + $0x8] sm:$0xff] %v535
        %545 = vst [vmem:[%s154 + $0x10] sm:$0xff] %v538
        %546 = vst [vmem:[%s154 + $0x18] sm:$0xff] %v541
        %s547 = sand.u32 %s72, 1
        %s548 = scalar_lea.sflag [#allocation4], %s547
        %s549 = sand.u32 %s72, 1
        %s550 = smul.addr %s549, 32
        %s551 = scalar_lea.vmem [#allocation5], %s550
        // Predicated region
        $region33: #{tpu_custom_call.1} parent=27 // pred_check
          %p552 = pneg %p82
        $region34: #{tpu_custom_call.1} parent=27 // pred_check_branch
          %554 = sbr.rel (%p552) target = $region36
        $region35: #{tpu_custom_call.1} parent=27 // pred_region
          %s555 = smul.u32 4, %s17
          %557 = vsyncadd %s548, 0
          %s558 = smul.addr %s555, 8
          %s559 = scalar_lea.hbm %s2, %s558
          %s560 = sshll.u32 %s551, 4
          %s561 = int_to_ptr.vmem [resolvable:$true] %s560
          %s562 = sshll.u32 %s559, 4
          %s563 = int_to_ptr.hbm [resolvable:$true] %s562
          %568 = dma.vmem_to_hbm [thread:$0]  %s561, 512, %s563, %s548, 128, 128, 8
        $region36: #{tpu_custom_call.1} parent=27 // pred_fallthru
          _
      $region28: #{tpu_custom_call.1} parent=5 // pred_fallthru
        _
      %p569 = scmp.le.s32.totalorder 2, %s12
      // Predicated region
      $region37: #{tpu_custom_call.1} parent=5 // pred_check
        %p570 = pneg %p569
      $region38: #{tpu_custom_call.1} parent=5 // pred_check_branch
        %572 = sbr.rel (%p570) target = $region40
      $region39: #{tpu_custom_call.1} parent=5 // pred_region
        %s573 = ssub.s32 %s12, 2
        // Predicated region
        $region41: #{tpu_custom_call.1} parent=39 // pred_check
          %p574 = pneg %p88
        $region42: #{tpu_custom_call.1} parent=39 // pred_check_branch
          %576 = sbr.rel (%p574) target = $region44
        $region43: #{tpu_custom_call.1} parent=39 // pred_region
          %s577 = sand.u32 %s73, 1
          %s578 = scalar_lea.sflag [#allocation4], %s577
          %s579 = sand.u32 %s73, 1
          %s580 = smul.addr %s579, 32
          %s581 = scalar_lea.vmem [#allocation5], %s580
          %583 = dma.done %s578, 512
        $region44: #{tpu_custom_call.1} parent=39 // pred_fallthru
          _
      $region40: #{tpu_custom_call.1} parent=5 // pred_fallthru
        _
    $region6: #{tpu_custom_call.1} parent=1 // loop_footer
      %s16 = sadd.s32 1, %s12
    $region7: #{tpu_custom_call.1} parent=1 // loop_footer_branch
      %11 = sbr.rel target = $region3
    $region8: #{tpu_custom_call.1} parent=1 // loop_exit
      _
    %584 = vsyncpa [#allocation3], 1
    %s585 = scalar_lea.sflag [#allocation3], 1
    %586 = vsyncpa %s585, 1
    %587 = vsyncpa [#allocation4], 1
    %s588 = scalar_lea.sflag [#allocation4], 1
    %589 = vsyncpa %s588, 1

</llo_original>
